<compile_context>
chip_gen: v6e
topology: v6e:2x2x1
jax: 0.10.0
libtpu: 0.0.40
codegen_flags: <defaults>
</compile_context>

<pallas_src>
import math

import jax
import jax.numpy as jnp
from jax.experimental import pallas as pl
from jax.experimental.pallas import tpu as pltpu


def _darknet_same_pads(H, W, ksize, stride, dkn_padding):
    """Per-side padding amounts exactly as the Darknet / PyTorch module computes them."""
    nops_h = math.ceil(H / stride)
    nops_w = math.ceil(W / stride)
    total_h = ksize + (nops_h - 1) * stride - H
    total_w = ksize + (nops_w - 1) * stride - W
    beg = int(dkn_padding / 2)
    return beg, total_h - beg, beg, total_w - beg  # (top, bottom, left, right)


def _vmem_capacity_bytes():
    """Per-core VMEM capacity; conservative (v7x) fallback if the query is unavailable."""
    try:
        cap = int(pltpu.get_tpu_info().vmem_capacity_bytes)
        if cap > 0:
            return cap
    except Exception:
        pass
    return 64 * 1024 * 1024


def _make_pad_kernel_2d(H_eff, W_eff, pb_h, pe_h, pb_w, pe_w, pad_val):
    """General path: 4-D blocks (1, tc, H, W) -> (1, tc, Ho, Wo).

    One full-tile splat fill (lane-dense store of the whole output block) followed by a
    single interior copy store.  Negative end padding is realized by reading only the
    first H_eff/W_eff rows/cols of the input block (static ref slice -> no extra DMA op).
    """
    del pe_h, pe_w  # implied by the output block shape

    def kernel(x_ref, o_ref):
        o_ref[...] = jnp.full(o_ref.shape, pad_val, o_ref.dtype)
        o_ref[:, :, pb_h:pb_h + H_eff, pb_w:pb_w + W_eff] = x_ref[:, :, :H_eff, :W_eff]

    return kernel


def _make_pad_kernel_rows(H_eff, W, pb_h, pe_h, pad_val):
    """H-only padding path: 3-D blocks (1, tc, H*W) -> (1, tc, Ho*W).

    Because there is no W padding, output rows stay contiguous with input rows, so the
    whole block is written as (at most) three wide contiguous lane ranges:
    [top pad | interior copy | bottom pad].
    """
    beg = pb_h * W
    mid = H_eff * W
    end = pe_h * W

    def kernel(x_ref, o_ref):
        dt = o_ref.dtype
        nb, nc = o_ref.shape[0], o_ref.shape[1]
        if beg:
            o_ref[:, :, 0:beg] = jnp.full((nb, nc, beg), pad_val, dt)
        o_ref[:, :, beg:beg + mid] = x_ref[:, :, 0:mid]
        if end:
            o_ref[:, :, beg + mid:beg + mid + end] = jnp.full((nb, nc, end), pad_val, dt)

    return kernel


def padding_same(x, ksize, stride, dkn_padding=None, padding_val=-1e10):
    """Pallas TPU equivalent of PaddingSame.forward; x is NCHW."""
    dkn = dkn_padding if dkn_padding else ksize - 1  # mirror module's truthiness check
    B, C, H, W = x.shape
    pb_h, pe_h, pb_w, pe_w = _darknet_same_pads(H, W, ksize, stride, dkn)
    assert pb_h >= 0 and pb_w >= 0, "negative begin padding not supported"

    # F.pad treats negative end padding as cropping that side.  Fold the crop into the
    # kernel (read fewer rows/cols of the input block) instead of a wrapper slice.
    H_eff, pe_h = H + min(pe_h, 0), max(pe_h, 0)
    W_eff, pe_w = W + min(pe_w, 0), max(pe_w, 0)
    Ho = pb_h + H_eff + pe_h
    Wo = pb_w + W_eff + pe_w
    assert Ho > 0 and Wo > 0, "output spatial size must be positive"

    # Fast paths: no pallas_call at all.
    if pb_h == 0 and pb_w == 0 and pe_h == 0 and pe_w == 0:
        if H_eff == H and W_eff == W:
            return x                          # true no-op (e.g. ksize == stride, even input)
        return x[:, :, :H_eff, :W_eff]        # crop-only case

    itemsize = jnp.dtype(x.dtype).itemsize
    vmem_cap = _vmem_capacity_bytes()
    budget = vmem_cap // 4                    # target for the double-buffered working set

    def working_set(tc):                      # BlockSpec double-buffers both in and out blocks
        return 2 * tc * (H * W + Ho * Wo) * itemsize

    # At least 2-4 channel blocks per batch for real-sized layers when B == 1 so that
    # v7x's two TensorCores (grid axes are "parallel") both get work.
    per_batch_bytes = C * (H * W + Ho * Wo) * itemsize
    min_blocks = 1
    if B == 1 and per_batch_bytes >= (1 << 20):
        min_blocks = 4 if C >= 4 else (2 if C >= 2 else 1)
    max_tc = max(1, C // min_blocks)

    divisors = [d for d in range(1, C + 1) if C % d == 0]

    # Flattened-spatial path only when there is no W padding and no W cropping.
    flat = (pb_w == 0 and pe_w == 0 and W_eff == W)
    if flat:
        # In the 3-D layout tc is the second-minor dim: must be a multiple of the sublane
        # granularity for this dtype, or equal to the full channel count.
        sub = 8 * max(1, 4 // itemsize)
        cand = [d for d in divisors
                if (d == C or d % sub == 0) and d <= max_tc and working_set(d) <= budget]
        if cand:
            tc = max(cand)
        elif working_set(C) <= budget:
            tc = C                            # tiny layer: one channel block is fine
        else:
            flat = False                      # no legal flattened tiling; use the 2-D path
    if not flat:
        cand = [d for d in divisors if d <= max_tc and working_set(d) <= budget]
        tc = max(cand) if cand else 1

    vmem_limit = min(max(vmem_cap // 2, working_set(tc) + (16 << 20)), (vmem_cap * 3) // 4)
    grid = (B, C // tc)
    cparams = pltpu.CompilerParams(
        dimension_semantics=("parallel", "parallel"),
        vmem_limit_bytes=vmem_limit,
    )
    pad_val = float(padding_val)

    if flat:
        out = pl.pallas_call(
            _make_pad_kernel_rows(H_eff, W, pb_h, pe_h, pad_val),
            out_shape=jax.ShapeDtypeStruct((B, C, Ho * W), x.dtype),
            grid=grid,
            in_specs=[pl.BlockSpec((1, tc, H * W), lambda b, c: (b, c, 0))],
            out_specs=pl.BlockSpec((1, tc, Ho * W), lambda b, c: (b, c, 0)),
            compiler_params=cparams,
        )(x.reshape(B, C, H * W))             # row-major collapse: free layout change
        return out.reshape(B, C, Ho, W)

    return pl.pallas_call(
        _make_pad_kernel_2d(H_eff, W_eff, pb_h, pe_h, pb_w, pe_w, pad_val),
        out_shape=jax.ShapeDtypeStruct((B, C, Ho, Wo), x.dtype),
        grid=grid,
        in_specs=[pl.BlockSpec((1, tc, H, W), lambda b, c: (b, c, 0, 0))],
        out_specs=pl.BlockSpec((1, tc, Ho, Wo), lambda b, c: (b, c, 0, 0)),
        compiler_params=cparams,
    )(x)


def padding_same_ref(x, ksize, stride, dkn_padding=None, padding_val=-1e10):
    """Pure-JAX reference (same formula as the PyTorch module, incl. negative-end crop)."""
    dkn = dkn_padding if dkn_padding else ksize - 1
    H, W = x.shape[2], x.shape[3]
    pb_h, pe_h, pb_w, pe_w = _darknet_same_pads(H, W, ksize, stride, dkn)
    if pe_h < 0:
        x = x[:, :, : H + pe_h, :]
        pe_h = 0
    if pe_w < 0:
        x = x[:, :, :, : W + pe_w]
        pe_w = 0
    return jnp.pad(x, ((0, 0), (0, 0), (pb_h, pe_h), (pb_w, pe_w)),
                   constant_values=padding_val)


if __name__ == "__main__":
    key = jax.random.PRNGKey(0)
    B, C, H, W = 2, 4, 16, 16
    x = jax.random.normal(key, (B, C, H, W), dtype=jnp.float32)
    x_odd_h = x[:, :, :15, :]   # 15 x 16
    x_odd_w = x[:, :, :, :15]   # 16 x 15

    cases = [
        (x,       dict(ksize=2, stride=1)),  # end-pad 1 on H and W -> 17x17 (2-D path)
        (x,       dict(ksize=3, stride=1)),  # pad (1,1) both dims  -> 18x18 (2-D path)
        (x,       dict(ksize=2, stride=2)),  # zero padding         -> identity fast path
        (x,       dict(ksize=1, stride=2)),  # crop 1 on both dims  -> crop-only fast path
        (x_odd_h, dict(ksize=2, stride=2)),  # H-only end pad       -> flattened lane-dense path
        (x_odd_w, dict(ksize=2, stride=3)),  # pad H end, crop W end-> 2-D path w/ in-kernel crop
    ]
    for xin, cfg in cases:
        y = jax.block_until_ready(padding_same(xin, **cfg))
        ref = padding_same_ref(xin, **cfg)
        assert y.shape == ref.shape, (cfg, y.shape, ref.shape)
        assert jnp.array_equal(y, ref), cfg

    # TODO(synk): integer-dtype inputs with the default -1e10 padding_val are not handled
    # (matches the module's intended float use for max-pool padding).

    print("KERNEL_OK")
</pallas_src>

<mosaic_0001>
module attributes {stable_mosaic.version = 11 : i64} {
  func.func @kernel(%arg0: i32, %arg1: i32, %arg2: memref<1x4x16x16xf32, #tpu.memory_space<vmem>>, %arg3: memref<1x4x17x17xf32, #tpu.memory_space<vmem>>) attributes {dimension_semantics = [#tpu.dimension_semantics<parallel>, #tpu.dimension_semantics<parallel>], iteration_bounds = array<i64: 2, 1>, scalar_prefetch = 0 : i64, scratch_operands = 0 : i64, tpu.core_type = #tpu.core_type<tc>, window_params = [{transform_indices = @transform_0, window_bounds = array<i64: 1, 4, 16, 16>}, {transform_indices = @transform_1, window_bounds = array<i64: 1, 4, 17, 17>}]} {
    %cst = arith.constant -1.000000e+10 : f32
    %0 = vector.broadcast %cst : f32 to vector<1x4x17x17xf32>
    %c0 = arith.constant 0 : index
    %c0_0 = arith.constant 0 : index
    %c0_1 = arith.constant 0 : index
    %c0_2 = arith.constant 0 : index
    %1 = vector.load %arg3[%c0, %c0_0, %c0_1, %c0_2] : memref<1x4x17x17xf32, #tpu.memory_space<vmem>>, vector<1x4x17x17xf32>
    tpu.vector_store %arg3[%c0, %c0_0, %c0_1, %c0_2], %0 {strides = array<i32>} : memref<1x4x17x17xf32, #tpu.memory_space<vmem>>, vector<1x4x17x17xf32>,
    %c0_3 = arith.constant 0 : index
    %c0_4 = arith.constant 0 : index
    %c0_5 = arith.constant 0 : index
    %c0_6 = arith.constant 0 : index
    %2 = vector.load %arg2[%c0_3, %c0_4, %c0_5, %c0_6] : memref<1x4x16x16xf32, #tpu.memory_space<vmem>>, vector<1x4x16x16xf32>
    %c0_7 = arith.constant 0 : index
    %c0_8 = arith.constant 0 : index
    %c0_9 = arith.constant 0 : index
    %c0_10 = arith.constant 0 : index
    %3 = vector.load %arg3[%c0_7, %c0_8, %c0_9, %c0_10] : memref<1x4x17x17xf32, #tpu.memory_space<vmem>>, vector<1x4x16x16xf32>
    tpu.vector_store %arg3[%c0_7, %c0_8, %c0_9, %c0_10], %2 {strides = array<i32>} : memref<1x4x17x17xf32, #tpu.memory_space<vmem>>, vector<1x4x16x16xf32>,
    return
  }
  func.func @transform_0(%arg0: i32, %arg1: i32) -> (i32, i32, i32, i32) {
    %c0_i32 = arith.constant 0 : i32
    %c0_i32_0 = arith.constant 0 : i32
    %c0_i32_1 = arith.constant 0 : i32
    return %arg0, %arg1, %c0_i32, %c0_i32_0 : i32, i32, i32, i32
  }
  func.func @transform_1(%arg0: i32, %arg1: i32) -> (i32, i32, i32, i32) {
    %c0_i32 = arith.constant 0 : i32
    %c0_i32_0 = arith.constant 0 : i32
    %c0_i32_1 = arith.constant 0 : i32
    return %arg0, %arg1, %c0_i32, %c0_i32_0 : i32, i32, i32, i32
  }
}

</mosaic_0001>

<llo_original>
// kernel: tpu_custom_call.1
$region0: #{tpu_custom_call.1}
  #allocation0 [shape = 'u32[]', space=smem, size = 0x4, offset = 0x4, fixed_abs, tag = 'smem constant byte address 0x4 - core index']
  #allocation1 [shape = 'u32[144,128]{1,0:T(1,128)}', space=vmem, size = 0x12000, scoped, tag = 'internal scratch']
  %s0 = inlined_call_operand.hbm [shape: f32[2,4,16,16], index: 0, kind: input, shape index: {}]
  %s1 = inlined_call_operand.vmem [shape: f32[2,4,17,17], index: 1, kind: output, shape index: {}]
  %s2 = sld [smem:[#allocation0]]
  $region41: #{tpu_custom_call.1} parent=0
    _
  %s4 = ssub.s32 1, %s2
  %s5 = scalar_select 0, %s4, %s2
  $region1: #{tpu_custom_call.1} parent=0
    #allocation2 [shape = 'u8[65536]{0}', space=vmem, size = 0x10000, scoped, tag = 'input window, operand 0']
    #allocation3 [shape = 's32[2]{0}', space=sflag, size = 0x8, scoped, tag = 'scoped memory for tpu_custom_call.1']
    %6 = vsyncpa [#allocation3], 0
    %s7 = scalar_lea.sflag [#allocation3], 1
    %8 = vsyncpa %s7, 0
    loop: start=0, step=1, limit=4
    $region2: #{tpu_custom_call.1} parent=1 // loop_pre_header
      _
    $region3: #{tpu_custom_call.1} parent=1 // loop_header
      %s10 = sphi 0, %s14
      %p11 = scmp.ge.s32.totalorder %s10, 4
      %s17 = sphi 0, %s29
      %s18 = sphi 0, %s25
      %s19 = sphi 0, %s17
      %s20 = sphi 0, %s18
      %s21 = sphi 0, %s19
      %s22 = sphi 0, %s20
      %s34 = sphi 0, %s36
      %s37 = sphi 0, %s34
      %s38 = sphi 0, %s37
      %s54 = sphi 0, %s38
      %s62 = sphi 0, %s64
      %s65 = sphi 0, %s62
      %s66 = sphi 0, %s65
      %s82 = sphi 0, %s66
    $region4: #{tpu_custom_call.1} parent=1 // loop_header_branch
      %13 = sbr.rel (%p11) target = $region8
    $region5: #{tpu_custom_call.1} parent=1 // loop_body
      %s15 = ssub.s32 %s10, 1
      %s16 = ssub.s32 %s10, 2
      %s23 = sadd.s32 1, %s18
      %p24 = scmp.ge.s32.totalorder %s23, 1
      %s25 = scalar_select %p24, 0, %s23
      %s26 = sadd.s32 1, %s17
      %s27 = scalar_select %p24, %s26, %s17
      %p28 = scmp.ge.s32.totalorder %s27, 2
      %s29 = scalar_select %p28, 0, %s27
      %s30 = ssub.s32 %s17, %s29
      %s31 = ssub.s32 %s18, %s25
      %s32 = sor.u32 %s30, %s31
      %p33 = scmp.eq.s32.totalorder %s32, 0
      %s35 = sadd.s32 %s34, 1
      %s36 = scalar_select %p33, %s34, %s35
      %p39 = pneg %p33
      %p40 = scmp.eq.s32.totalorder %s10, 1
      %p41 = por %p39, %p40
      %p42 = scmp.ne.s32.totalorder %s34, %s37
      %p43 = scmp.eq.s32.totalorder %s10, 0
      %p44 = por %p42, %p43
      %p45 = scmp.ne.s32.totalorder %s34, %s37
      %p46 = scmp.eq.s32.totalorder %s15, 1
      %p47 = por %p45, %p46
      %p48 = scmp.ne.s32.totalorder %s37, %s38
      %p49 = scmp.eq.s32.totalorder %s15, 0
      %p50 = por %p48, %p49
      %p51 = scmp.ne.s32.totalorder %s37, %s38
      %p52 = scmp.eq.s32.totalorder %s16, 1
      %p53 = por %p51, %p52
      %p55 = scmp.ne.s32.totalorder %s38, %s54
      %p56 = scmp.eq.s32.totalorder %s16, 0
      %p57 = por %p55, %p56
      %s58 = ssub.s32 %s17, %s29
      %s59 = ssub.s32 %s18, %s25
      %s60 = sor.u32 %s58, %s59
      %p61 = scmp.eq.s32.totalorder %s60, 0
      %s63 = sadd.s32 %s62, 1
      %s64 = scalar_select %p61, %s62, %s63
      %p67 = pneg %p61
      %p68 = scmp.eq.s32.totalorder %s10, 1
      %p69 = por %p67, %p68
      %p70 = scmp.ne.s32.totalorder %s62, %s65
      %p71 = scmp.eq.s32.totalorder %s10, 0
      %p72 = por %p70, %p71
      %p73 = scmp.ne.s32.totalorder %s62, %s65
      %p74 = scmp.eq.s32.totalorder %s15, 1
      %p75 = por %p73, %p74
      %p76 = scmp.ne.s32.totalorder %s65, %s66
      %p77 = scmp.eq.s32.totalorder %s15, 0
      %p78 = por %p76, %p77
      %p79 = scmp.ne.s32.totalorder %s65, %s66
      %p80 = scmp.eq.s32.totalorder %s16, 1
      %p81 = por %p79, %p80
      %p83 = scmp.ne.s32.totalorder %s66, %s82
      %p84 = scmp.eq.s32.totalorder %s16, 0
      %p85 = por %p83, %p84
      %p86 = scmp.le.s32.totalorder 1, %s10
      %p87 = scmp.lt.s32.totalorder %s10, 3
      %p88 = pnand %p86, %p87
      %p89 = pneg %p88
      // Predicated region
      $region9: #{tpu_custom_call.1} parent=5 // pred_check
        _
      $region10: #{tpu_custom_call.1} parent=5 // pred_check_branch
        %91 = sbr.rel (%p88) target = $region12
      $region11: #{tpu_custom_call.1} parent=5 // pred_region
        %s92 = ssub.s32 %s10, 1
      $region12: #{tpu_custom_call.1} parent=5 // pred_fallthru
        _
      %p93 = scmp.lt.s32.totalorder %s10, 2
      // Predicated region
      $region13: #{tpu_custom_call.1} parent=5 // pred_check
        %p94 = pneg %p93
      $region14: #{tpu_custom_call.1} parent=5 // pred_check_branch
        %96 = sbr.rel (%p94) target = $region16
      $region15: #{tpu_custom_call.1} parent=5 // pred_region
        // Predicated region
        $region17: #{tpu_custom_call.1} parent=15 // pred_check
          %p97 = pneg %p44
        $region18: #{tpu_custom_call.1} parent=15 // pred_check_branch
          %99 = sbr.rel (%p97) target = $region20
        $region19: #{tpu_custom_call.1} parent=15 // pred_region
          %s100 = sand.u32 %s34, 1
          %s101 = scalar_lea.sflag [#allocation3], %s100
          %s102 = sand.u32 %s34, 1
          %s103 = smul.addr %s102, 64
          %s104 = scalar_lea.vmem [#allocation2], %s103
          %s105 = smul.u32 4, %s18
          %s107 = ssub.s32 1024, 1024
          %108 = vsyncadd %s101, %s107
          %s109 = smul.addr %s105, 2
          %s110 = smul.addr %s17, 8
          %s111 = sadd.s32 %s109, %s110
          %s112 = smul.addr %s111, 128
          %s113 = scalar_lea.hbm %s0, %s112
          %s114 = sshll.u32 %s104, 4
          %s115 = int_to_ptr.vmem [resolvable:$true] %s114
          %120 = dma.hbm_to_vmem [thread:$0]  %s113, 1024, %s115, %s101, 128, 128, 8
        $region20: #{tpu_custom_call.1} parent=15 // pred_fallthru
          _
      $region16: #{tpu_custom_call.1} parent=5 // pred_fallthru
        _
      %p121 = scmp.le.s32.totalorder 1, %s10
      %p122 = scmp.lt.s32.totalorder %s10, 3
      %p123 = pnand %p121, %p122
      %p124 = pneg %p123
      // Predicated region
      $region21: #{tpu_custom_call.1} parent=5 // pred_check
        _
      $region22: #{tpu_custom_call.1} parent=5 // pred_check_branch
        %126 = sbr.rel (%p123) target = $region24
      $region23: #{tpu_custom_call.1} parent=5 // pred_region
        %s127 = ssub.s32 %s10, 1
        %s128 = sand.u32 %s37, 1
        %s129 = scalar_lea.sflag [#allocation3], %s128
        %s130 = sand.u32 %s37, 1
        %s131 = smul.addr %s130, 64
        %s132 = scalar_lea.vmem [#allocation2], %s131
        // Predicated region
        $region25: #{tpu_custom_call.1} parent=23 // pred_check
          %p133 = pneg %p50
        $region26: #{tpu_custom_call.1} parent=23 // pred_check_branch
          %135 = sbr.rel (%p133) target = $region28
        $region27: #{tpu_custom_call.1} parent=23 // pred_region
          %136 = dma.done %s129, 1024
        $region28: #{tpu_custom_call.1} parent=23 // pred_fallthru
          _
        %s137 = sand.u32 %s37, 1
        %s138 = scalar_lea.sflag [#allocation3], %s137
        %s139 = sand.u32 %s37, 1
        %s140 = smul.addr %s139, 64
        %s141 = scalar_lea.vmem [#allocation2], %s140
        %p142 = pneg %p50
        %p143 = pneg %p47
        %p144 = pneg %p78
        %p145 = pneg %p75
        %s146 = smul.u32 4, %s20
        %p147 = scmp.lt.s32.totalorder %s19, 1
        %s148 = scalar_select %p147, %s19, 1
        %p149 = scmp.lt.s32.totalorder %s146, 3
        %s150 = scalar_select %p149, %s146, 3
        %s151 = smul.addr %s150, 3
        %s152 = smul.addr %s148, 12
        %s153 = sadd.s32 %s151, %s152
        %s154 = smul.addr %s153, 8
        %s155 = scalar_lea.vmem %s1, %s154
        %s156 = smul.u32 4, %s20
        %s157 = smul.u32 4, %s20
        %p158 = scmp.lt.s32.totalorder %s19, 1
        %s159 = scalar_select %p158, %s19, 1
        %p160 = scmp.lt.s32.totalorder %s157, 3
        %s161 = scalar_select %p160, %s157, 3
        %s162 = smul.addr %s161, 3
        %s163 = smul.addr %s159, 12
        %s164 = sadd.s32 %s162, %s163
        %s165 = smul.addr %s164, 8
        %s166 = scalar_lea.vmem %s1, %s165
        %s167 = smul.u32 4, %s20
        %vm168 = vcmask 138240
        %169 = vst.msk [vmem:[%s166] sm:$0xff] %vm168, -1e+10
        %170 = vst.msk [vmem:[%s166 + $0x8] sm:$0xff] %vm168, -1e+10
        %vm171 = vcmask 131072
        %172 = vst.msk [vmem:[%s166 + $0x10] sm:$0x1] %vm171, -1e+10
        %173 = vst.msk [vmem:[%s166 + $0x18] sm:$0xff] %vm168, -1e+10
        %174 = vst.msk [vmem:[%s166 + $0x20] sm:$0xff] %vm168, -1e+10
        %175 = vst.msk [vmem:[%s166 + $0x28] sm:$0x1] %vm171, -1e+10
        %176 = vst.msk [vmem:[%s166 + $0x30] sm:$0xff] %vm168, -1e+10
        %177 = vst.msk [vmem:[%s166 + $0x38] sm:$0xff] %vm168, -1e+10
        %178 = vst.msk [vmem:[%s166 + $0x40] sm:$0x1] %vm171, -1e+10
        %179 = vst.msk [vmem:[%s166 + $0x48] sm:$0xff] %vm168, -1e+10
        %180 = vst.msk [vmem:[%s166 + $0x50] sm:$0xff] %vm168, -1e+10
        %181 = vst.msk [vmem:[%s166 + $0x58] sm:$0x1] %vm171, -1e+10
        %v182 = vld [vmem:[%s132] sm:$0xff]
        %v183 = vld [vmem:[%s132 + $0x8] sm:$0xff]
        %v184 = vld [vmem:[%s132 + $0x10] sm:$0xff]
        %v185 = vld [vmem:[%s132 + $0x18] sm:$0xff]
        %v186 = vld [vmem:[%s132 + $0x20] sm:$0xff]
        %v187 = vld [vmem:[%s132 + $0x28] sm:$0xff]
        %v188 = vld [vmem:[%s132 + $0x30] sm:$0xff]
        %v189 = vld [vmem:[%s132 + $0x38] sm:$0xff]
        %vm190 = vcmask 130048
        %191 = vst.msk [vmem:[%s166] sm:$0xff] %vm190, %v182
        %192 = vst.msk [vmem:[%s166 + $0x8] sm:$0xff] %vm190, %v183
        %193 = vst.msk [vmem:[%s166 + $0x18] sm:$0xff] %vm190, %v184
        %194 = vst.msk [vmem:[%s166 + $0x20] sm:$0xff] %vm190, %v185
        %195 = vst.msk [vmem:[%s166 + $0x30] sm:$0xff] %vm190, %v186
        %196 = vst.msk [vmem:[%s166 + $0x38] sm:$0xff] %vm190, %v187
        %197 = vst.msk [vmem:[%s166 + $0x48] sm:$0xff] %vm190, %v188
        %198 = vst.msk [vmem:[%s166 + $0x50] sm:$0xff] %vm190, %v189
        %s199 = smul.u32 4, %s20
        %p200 = scmp.lt.s32.totalorder %s19, 1
        %s201 = scalar_select %p200, %s19, 1
        %p202 = scmp.lt.s32.totalorder %s199, 3
        %s203 = scalar_select %p202, %s199, 3
        %s204 = smul.addr %s203, 3
        %s205 = smul.addr %s201, 12
        %s206 = sadd.s32 %s204, %s205
        %s207 = smul.addr %s206, 8
        %s208 = scalar_lea.vmem %s1, %s207
        // Predicated region
        $region29: #{tpu_custom_call.1} parent=23 // pred_check
          %p209 = pneg %p75
        $region30: #{tpu_custom_call.1} parent=23 // pred_check_branch
          %211 = sbr.rel (%p209) target = $region32
        $region31: #{tpu_custom_call.1} parent=23 // pred_region
          %s212 = smul.u32 4, %s20
        $region32: #{tpu_custom_call.1} parent=23 // pred_fallthru
          _
      $region24: #{tpu_custom_call.1} parent=5 // pred_fallthru
        _
      %p213 = scmp.le.s32.totalorder 2, %s10
      // Predicated region
      $region33: #{tpu_custom_call.1} parent=5 // pred_check
        %p214 = pneg %p213
      $region34: #{tpu_custom_call.1} parent=5 // pred_check_branch
        %216 = sbr.rel (%p214) target = $region36
      $region35: #{tpu_custom_call.1} parent=5 // pred_region
        %s217 = ssub.s32 %s10, 2
        // Predicated region
        $region37: #{tpu_custom_call.1} parent=35 // pred_check
          %p218 = pneg %p81
        $region38: #{tpu_custom_call.1} parent=35 // pred_check_branch
          %220 = sbr.rel (%p218) target = $region40
        $region39: #{tpu_custom_call.1} parent=35 // pred_region
          %s221 = smul.u32 4, %s22
          %p222 = scmp.lt.s32.totalorder %s21, 1
          %s223 = scalar_select %p222, %s21, 1
          %p224 = scmp.lt.s32.totalorder %s221, 3
          %s225 = scalar_select %p224, %s221, 3
          %s226 = smul.addr %s225, 3
          %s227 = smul.addr %s223, 12
          %s228 = sadd.s32 %s226, %s227
          %s229 = smul.addr %s228, 8
          %s230 = scalar_lea.vmem %s1, %s229
        $region40: #{tpu_custom_call.1} parent=35 // pred_fallthru
          _
      $region36: #{tpu_custom_call.1} parent=5 // pred_fallthru
        _
    $region6: #{tpu_custom_call.1} parent=1 // loop_footer
      %s14 = sadd.s32 1, %s10
    $region7: #{tpu_custom_call.1} parent=1 // loop_footer_branch
      %9 = sbr.rel target = $region3
    $region8: #{tpu_custom_call.1} parent=1 // loop_exit
      _
    %231 = vsyncpa [#allocation3], 1
    %s232 = scalar_lea.sflag [#allocation3], 1
    %233 = vsyncpa %s232, 1

</llo_original>
